<compile_context>
chip_gen: v5e
topology: v5e:2x2
jax: 0.10.0
libtpu: 0.0.40
codegen_flags: <defaults>
</compile_context>

<pallas_src>
import functools

import jax
import jax.numpy as jnp
from jax.experimental import pallas as pl
from jax.experimental.pallas import tpu as pltpu

# ----- stand-in model dims ----------------------------------------------------
B = 2      # bags per call
P = 8      # patches per bag (real MIL: hundreds; M = B*P feeds the MXU rows)
F = 512    # input features per patch   (orig 100352)
H1 = 256   # fc1 out                    (orig 12544)
H2 = 128   # fc2 out                    (orig 500 -> padded to lane multiple)
AH = 128   # attention hidden           (orig 100 -> padded to lane multiple)
E = 128    # embedding dim              (orig 256)


# =============================================================================
# 1) Gridded, weight-streaming  relu(x @ W + b)   (used for fc1 and fc2)
# =============================================================================
def _linear_relu_kernel(x_ref, w_ref, b_ref, o_ref, acc_ref):
    """One (M, tn) output tile; grid axis 1 (K) accumulates into VMEM."""
    k = pl.program_id(1)

    @pl.when(k == 0)
    def _():
        acc_ref[...] = jnp.zeros_like(acc_ref)

    # bf16 MXU operands (activations already bf16 — no per-step cast),
    # f32 accumulation.
    acc_ref[...] += jnp.dot(x_ref[...], w_ref[...],
                            preferred_element_type=jnp.float32)

    @pl.when(k == pl.num_programs(1) - 1)
    def _():
        o_ref[...] = jnp.maximum(acc_ref[...] + b_ref[...], 0.0).astype(o_ref.dtype)


def linear_relu(x, w, b, *, out_dtype=jnp.float32, tn=1792, tk=2048):
    """relu(x @ w + b): x (M, K) bf16, w (K, N) bf16, b (1, N) f32 -> (M, N).

    Single M tile (tm == M): the weight index_map is independent of the row
    tile, so re-tiling M would re-stream the whole weight from HBM.  Defaults
    tn/tk are sized for the real dims (N = 12544 = 98*128, so legal
    lane-aligned tn values are 128/256/896/1792/6272/12544); they are clamped
    to the layer dims here.  Re-sweep per generation:
      v7x : tn=1792, tk=2048 (64 MiB physical VMEM; N-axis megacore split),
      v6e : tn=6272, tk=2048 (128 MiB VMEM allows much bigger weight tiles),
      v5e : MXU-bound past tm*tn/(tm+tn) ~ 240; prefer MXU-friendly multiples.
    """
    M, K = x.shape
    Kw, N = w.shape
    assert K == Kw and b.shape == (1, N)
    tn = min(tn, N)
    tk = min(tk, K)
    # Small-weight special case (fc2 at real dims on v5e/v6e, both layers at
    # toy dims): take the whole K extent in one step — no accumulator revisit.
    if K * tn * w.dtype.itemsize <= (12 << 20):
        tk = K
    assert N % tn == 0 and K % tk == 0, "pad N/K or pick divisor-aligned tn/tk"
    grid = (N // tn, K // tk)

    x_item = jnp.dtype(x.dtype).itemsize
    w_item = jnp.dtype(w.dtype).itemsize
    o_item = jnp.dtype(out_dtype).itemsize

    # Double-buffered pipeline tiles + resident f32 accumulator, with headroom;
    # capped at 48 MiB so the limit is legal on v7x's 64 MiB physical VMEM.
    tile_bytes = (M * tk * x_item + tk * tn * w_item + tn * 4 + M * tn * o_item)
    vmem_limit = int(min(max(2 * tile_bytes + M * tn * 4 + (8 << 20), 32 << 20),
                         48 << 20))

    cost = pl.CostEstimate(
        flops=2 * M * K * N,
        transcendentals=0,
        bytes_accessed=int(K * N * w_item            # weight stream (once)
                           + M * K * x_item * (N // tn)  # acts re-read per N tile
                           + M * N * o_item + N * 4),
    )

    return pl.pallas_call(
        _linear_relu_kernel,
        out_shape=jax.ShapeDtypeStruct((M, N), out_dtype),
        grid_spec=pltpu.PrefetchScalarGridSpec(
            num_scalar_prefetch=0,
            grid=grid,
            in_specs=[
                pl.BlockSpec((M, tk), lambda j, k: (0, k)),   # activations (bf16)
                # TODO(synk): at real dims sweep pipeline_mode=pl.Buffered(3)
                # on this weight spec (v5e/v6e) to hide DMA handoff latency.
                pl.BlockSpec((tk, tn), lambda j, k: (k, j)),  # weights (bf16)
                pl.BlockSpec((1, tn), lambda j, k: (0, j)),   # bias (f32)
            ],
            out_specs=pl.BlockSpec((M, tn), lambda j, k: (0, j)),
            scratch_shapes=[pltpu.VMEM((M, tn), jnp.float32)],
        ),
        compiler_params=pltpu.CompilerParams(
            # N axis parallel: each core gets disjoint weight columns (no
            # duplicated HBM traffic); K is the reduction -> arbitrary.
            dimension_semantics=("parallel", "arbitrary"),
            vmem_limit_bytes=vmem_limit),
        cost_estimate=cost,
    )(x, w, b)


# =============================================================================
# 2) Fused attention-pooling head (small dims, VMEM resident, no grid)
# =============================================================================
def _attn_head_kernel(h2_ref, wa_ref, ba_ref, wv_ref, bv_ref,
                      we_ref, be_ref, w3_ref, b3_ref,
                      y_ref, emb_ref, attn_ref, *, valid_patches):
    b, pp = attn_ref.shape                                       # pp = padded P
    h2 = h2_ref[...]                                             # (B*PP, H2) f32

    # attention_scores = relu(attention_fc(h2))
    s = jnp.dot(h2, wa_ref[...], preferred_element_type=jnp.float32) + ba_ref[...]
    s = jnp.maximum(s, 0.0)                                      # (B*PP, AH)

    # attention_weights: Linear(AH, 1) as a lane reduction, laid out (B, PP)
    # so the patch axis is lane-major for the softmax.
    sw = s * wv_ref[...]                                         # (B*PP, AH)
    logits = jnp.sum(sw.reshape(b, pp, sw.shape[-1]), axis=-1) + bv_ref[0, 0]
    a = jax.nn.sigmoid(logits)                                   # (B, PP)

    # Mask padded patches so they receive exactly zero softmax weight.
    patch_idx = jax.lax.broadcasted_iota(jnp.int32, (b, pp), 1)
    a = jnp.where(patch_idx < valid_patches, a, -jnp.inf)

    # softmax over the patch (lane) axis
    a_max = jnp.max(a, axis=-1, keepdims=True)
    a_exp = jnp.exp(a - a_max)
    denom = jnp.sum(a_exp, axis=-1, keepdims=True)
    a_sm = a_exp * pl.reciprocal(denom, approx=True)             # (B, PP)
    attn_ref[...] = a_sm

    # Weighted aggregation as ONE plain MXU matmul: scatter per-bag attention
    # weights into a (B, B*PP) block-diagonal matrix and multiply by the flat
    # (B*PP, H2) activations.
    col = jax.lax.broadcasted_iota(jnp.int32, (b, b * pp), 1)
    row = jax.lax.broadcasted_iota(jnp.int32, (b, b * pp), 0)
    a_block = jnp.where(col // pp == row, jnp.tile(a_sm, (1, b)), 0.0)  # (B, B*PP)
    agg = jnp.dot(a_block, h2, preferred_element_type=jnp.float32)      # (B, H2)

    # bag_embedding = relu(embedding(agg))
    emb = jnp.dot(agg, we_ref[...], preferred_element_type=jnp.float32) + be_ref[...]
    emb = jnp.maximum(emb, 0.0)
    emb_ref[...] = emb                                           # (B, E)

    # prediction = sigmoid(fc3(emb)); Linear(E, 1) as a lane reduction.
    # Stored lane-dense: broadcast across 128 lanes (wrapper slices col 0).
    logit3 = jnp.sum(emb * w3_ref[...], axis=-1, keepdims=True) + b3_ref[0, 0]
    y_ref[...] = jnp.broadcast_to(jax.nn.sigmoid(logit3), y_ref.shape)


def _attn_head(h2_flat, wa, ba, wv, bv, we, be, w3, b3,
               *, batch, padded_patches, valid_patches):
    vmem = pl.BlockSpec(memory_space=pltpu.MemorySpace.VMEM)
    smem = pl.BlockSpec(memory_space=pltpu.MemorySpace.SMEM)
    e_dim = we.shape[1]
    kernel = functools.partial(_attn_head_kernel, valid_patches=valid_patches)
    out_shape = (
        jax.ShapeDtypeStruct((batch, 128), jnp.float32),             # lane-dense y
        jax.ShapeDtypeStruct((batch, e_dim), jnp.float32),           # bag embedding
        jax.ShapeDtypeStruct((batch, padded_patches), jnp.float32),  # attn (B, PP)
    )
    return pl.pallas_call(
        kernel,
        out_shape=out_shape,
        in_specs=[vmem, vmem, vmem, vmem, smem, vmem, vmem, vmem, smem],
        out_specs=(vmem, vmem, vmem),
    )(h2_flat, wa, ba, wv, bv, we, be, w3, b3)


# =============================================================================
# Full forward
# =============================================================================
def attn_mil_forward(x, params):
    (w1, b1, w2, b2, wa, ba, wv, bv, we, be, w3, b3) = params
    batch, patches, feats = x.shape

    # Flatten all bags' patches into one LHS (M = B*P rows) and cast to bf16
    # once, outside the gridded kernels (halves activation HBM traffic and
    # removes the per-step VPU cast).
    xf = x.reshape(batch * patches, feats).astype(jnp.bfloat16)
    h1 = linear_relu(xf, w1, b1, out_dtype=jnp.bfloat16)   # fc1 -> bf16 acts
    h2 = linear_relu(h1, w2, b2, out_dtype=jnp.float32)    # fc2 -> f32 for head

    # Pad the patch axis to a lane multiple so the head's softmax/attn output
    # is lane-dense; padded patches are masked to -inf inside the kernel.
    pp = max(128, ((patches + 127) // 128) * 128)
    h2_b = h2.reshape(batch, patches, -1)
    if pp != patches:
        h2_b = jnp.pad(h2_b, ((0, 0), (0, pp - patches), (0, 0)))
    h2_flat = h2_b.reshape(batch * pp, h2.shape[-1])

    y_slab, emb, attn_pad = _attn_head(h2_flat, wa, ba, wv, bv, we, be, w3, b3,
                                       batch=batch, padded_patches=pp,
                                       valid_patches=patches)

    # Un-pad the lane-dense outputs back to the module's shapes.
    y = y_slab[:, :1]                                           # (B, 1)
    attention_scores = attn_pad[:, :patches].reshape(batch, patches, 1)
    return y, emb, attention_scores


# =============================================================================
# Parameters / reference / test
# =============================================================================
def init_params(key):
    """Synthetic params, (in, out) layout. fc1/fc2 weights stored bf16."""
    ks = jax.random.split(key, 12)
    s = 0.02
    w1 = (s * jax.random.normal(ks[0], (F, H1), jnp.float32)).astype(jnp.bfloat16)
    b1 = s * jax.random.normal(ks[1], (1, H1), jnp.float32)
    w2 = (s * jax.random.normal(ks[2], (H1, H2), jnp.float32)).astype(jnp.bfloat16)
    b2 = s * jax.random.normal(ks[3], (1, H2), jnp.float32)
    wa = s * jax.random.normal(ks[4], (H2, AH), jnp.float32)
    ba = s * jax.random.normal(ks[5], (1, AH), jnp.float32)
    wv = s * jax.random.normal(ks[6], (1, AH), jnp.float32)   # Linear(AH, 1) row
    bv = s * jax.random.normal(ks[7], (1, 1), jnp.float32)
    we = s * jax.random.normal(ks[8], (H2, E), jnp.float32)
    be = s * jax.random.normal(ks[9], (1, E), jnp.float32)
    w3 = s * jax.random.normal(ks[10], (1, E), jnp.float32)   # Linear(E, 1) row
    b3 = s * jax.random.normal(ks[11], (1, 1), jnp.float32)
    return (w1, b1, w2, b2, wa, ba, wv, bv, we, be, w3, b3)


def reference_forward(x, params):
    """Pure-JAX reference mirroring the kernel's dtypes (bf16 fc1/fc2 path)."""
    (w1, b1, w2, b2, wa, ba, wv, bv, we, be, w3, b3) = params
    b, p, f = x.shape
    xf = x.reshape(b * p, f).astype(jnp.bfloat16)
    h1 = jax.nn.relu(jnp.dot(xf, w1, preferred_element_type=jnp.float32)
                     + b1).astype(jnp.bfloat16)
    h2 = jax.nn.relu(jnp.dot(h1, w2, preferred_element_type=jnp.float32) + b2)
    s = jax.nn.relu(h2 @ wa + ba)
    a = jax.nn.sigmoid(jnp.sum(s * wv, axis=-1, keepdims=True) + bv).reshape(b, p, 1)
    a = jax.nn.softmax(a, axis=1)
    agg = jnp.sum(h2.reshape(b, p, -1) * a, axis=1)
    emb = jax.nn.relu(agg @ we + be)
    y = jax.nn.sigmoid(jnp.sum(emb * w3, axis=-1, keepdims=True) + b3)
    return y, emb, a


if __name__ == "__main__":
    key = jax.random.PRNGKey(0)
    kx, kp = jax.random.split(key)
    x = jax.random.normal(kx, (B, P, F), jnp.float32)
    params = init_params(kp)

    y, emb, attn = attn_mil_forward(x, params)
    jax.block_until_ready((y, emb, attn))

    y_ref, emb_ref, attn_ref = reference_forward(x, params)
    assert y.shape == (B, 1) and emb.shape == (B, E) and attn.shape == (B, P, 1)
    # Tolerances account for bf16 MXU operands, accumulation-order differences
    # and the approximate (EUP) reciprocal in the softmax.
    assert jnp.allclose(y, y_ref, atol=1e-2, rtol=1e-2)
    assert jnp.allclose(emb, emb_ref, atol=1e-2, rtol=1e-2)
    assert jnp.allclose(attn, attn_ref, atol=1e-2, rtol=1e-2)

    print("KERNEL_OK")
</pallas_src>

<mosaic_0001>
module attributes {stable_mosaic.version = 11 : i64} {
  func.func @_linear_relu_kernel(%arg0: i32, %arg1: i32, %arg2: memref<16x512xbf16, #tpu.memory_space<vmem>>, %arg3: memref<512x256xbf16, #tpu.memory_space<vmem>>, %arg4: memref<1x256xf32, #tpu.memory_space<vmem>>, %arg5: memref<16x256xbf16, #tpu.memory_space<vmem>>, %arg6: memref<16x256xf32, #tpu.memory_space<vmem>>) attributes {dimension_semantics = [#tpu.dimension_semantics<parallel>, #tpu.dimension_semantics<arbitrary>], iteration_bounds = array<i64: 1, 1>, scalar_prefetch = 0 : i64, scratch_operands = 1 : i64, tpu.core_type = #tpu.core_type<tc>, window_params = [{transform_indices = @transform_0, window_bounds = array<i64: 16, 512>}, {transform_indices = @transform_1, window_bounds = array<i64: 512, 256>}, {transform_indices = @transform_2, window_bounds = array<i64: 1, 256>}, {transform_indices = @transform_3, window_bounds = array<i64: 16, 256>}]} {
    %c0_i32 = arith.constant 0 : i32
    %0 = arith.cmpi eq, %arg1, %c0_i32 : i32
    %1 = arith.extui %0 : i1 to i32
    %c0_i32_0 = arith.constant 0 : i32
    %2 = arith.cmpi ne, %1, %c0_i32_0 : i32
    scf.if %2 {
      %cst_10 = arith.constant 0.000000e+00 : f32
      %12 = vector.broadcast %cst_10 : f32 to vector<16x256xf32>
      %c0_11 = arith.constant 0 : index
      %c0_12 = arith.constant 0 : index
      %13 = vector.load %arg6[%c0_11, %c0_12] : memref<16x256xf32, #tpu.memory_space<vmem>>, vector<16x256xf32>
      tpu.vector_store %arg6[%c0_11, %c0_12], %12 {strides = array<i32>} : memref<16x256xf32, #tpu.memory_space<vmem>>, vector<16x256xf32>,
    } else {
    }
    %c0 = arith.constant 0 : index
    %c0_1 = arith.constant 0 : index
    %3 = vector.load %arg6[%c0, %c0_1] : memref<16x256xf32, #tpu.memory_space<vmem>>, vector<16x256xf32>
    %c0_2 = arith.constant 0 : index
    %c0_3 = arith.constant 0 : index
    %4 = vector.load %arg2[%c0_2, %c0_3] : memref<16x512xbf16, #tpu.memory_space<vmem>>, vector<16x512xbf16>
    %c0_4 = arith.constant 0 : index
    %c0_5 = arith.constant 0 : index
    %5 = vector.load %arg3[%c0_4, %c0_5] : memref<512x256xbf16, #tpu.memory_space<vmem>>, vector<512x256xbf16>
    %cst = arith.constant dense<0.000000e+00> : vector<16x256xf32>
    %6 = tpu.matmul %4, %5, %cst {dimension_numbers = #tpu.dot_dimension_numbers<[1], [0], [0], [1], [0, 0, 1, 1], [], []>} : vector<16x512xbf16>, vector<512x256xbf16>, vector<16x256xf32> -> vector<16x256xf32>
    %7 = arith.addf %3, %6 : vector<16x256xf32>
    %c0_6 = arith.constant 0 : index
    %c0_7 = arith.constant 0 : index
    %8 = vector.load %arg6[%c0_6, %c0_7] : memref<16x256xf32, #tpu.memory_space<vmem>>, vector<16x256xf32>
    tpu.vector_store %arg6[%c0_6, %c0_7], %7 {strides = array<i32>} : memref<16x256xf32, #tpu.memory_space<vmem>>, vector<16x256xf32>,
    %c0_i32_8 = arith.constant 0 : i32
    %9 = arith.cmpi eq, %arg1, %c0_i32_8 : i32
    %10 = arith.extui %9 : i1 to i32
    %c0_i32_9 = arith.constant 0 : i32
    %11 = arith.cmpi ne, %10, %c0_i32_9 : i32
    scf.if %11 {
      %c0_10 = arith.constant 0 : index
      %c0_11 = arith.constant 0 : index
      %12 = vector.load %arg6[%c0_10, %c0_11] : memref<16x256xf32, #tpu.memory_space<vmem>>, vector<16x256xf32>
      %c0_12 = arith.constant 0 : index
      %c0_13 = arith.constant 0 : index
      %13 = vector.load %arg4[%c0_12, %c0_13] : memref<1x256xf32, #tpu.memory_space<vmem>>, vector<1x256xf32>
      %14 = vector.broadcast %13 : vector<1x256xf32> to vector<16x256xf32>
      %15 = arith.addf %12, %14 : vector<16x256xf32>
      %cst_14 = arith.constant 0.000000e+00 : f32
      %16 = vector.broadcast %cst_14 : f32 to vector<16x256xf32>
      %17 = arith.maximumf %15, %16 : vector<16x256xf32>
      %18 = arith.truncf %17 : vector<16x256xf32> to vector<16x256xbf16>
      %c0_15 = arith.constant 0 : index
      %c0_16 = arith.constant 0 : index
      %19 = vector.load %arg5[%c0_15, %c0_16] : memref<16x256xbf16, #tpu.memory_space<vmem>>, vector<16x256xbf16>
      tpu.vector_store %arg5[%c0_15, %c0_16], %18 {strides = array<i32>} : memref<16x256xbf16, #tpu.memory_space<vmem>>, vector<16x256xbf16>,
    } else {
    }
    return
  }
  func.func @transform_0(%arg0: i32, %arg1: i32) -> (i32, i32) {
    %c0_i32 = arith.constant 0 : i32
    %c0_i32_0 = arith.constant 0 : i32
    return %c0_i32, %arg1 : i32, i32
  }
  func.func @transform_1(%arg0: i32, %arg1: i32) -> (i32, i32) {
    %c0_i32 = arith.constant 0 : i32
    return %arg1, %arg0 : i32, i32
  }
  func.func @transform_2(%arg0: i32, %arg1: i32) -> (i32, i32) {
    %c0_i32 = arith.constant 0 : i32
    %c0_i32_0 = arith.constant 0 : i32
    return %c0_i32, %arg0 : i32, i32
  }
  func.func @transform_3(%arg0: i32, %arg1: i32) -> (i32, i32) {
    %c0_i32 = arith.constant 0 : i32
    %c0_i32_0 = arith.constant 0 : i32
    return %c0_i32, %arg0 : i32, i32
  }
}

</mosaic_0001>

<llo_original>
// kernel: tpu_custom_call.1
$region0: #{tpu_custom_call.1}
  #allocation0 [shape = 'u32[]', space=smem, size = 0x4, offset = 0x4, fixed_abs, tag = 'smem constant byte address 0x4 - core index']
  #allocation1 [shape = 'u32[72,128]{1,0:T(1,128)}', space=vmem, size = 0x9000, scoped, tag = 'internal scratch']
  #allocation2 [shape = 'f32[16,256]{1,0:T(8,128)}', space=vmem, size = 0x4000, scoped, tag = 'scratch operand']
  %s0 = inlined_call_operand.hbm [shape: bf16[16,512], index: 0, kind: input, shape index: {}]
  %s1 = inlined_call_operand.hbm [shape: bf16[512,256], index: 1, kind: input, shape index: {}]
  %s2 = inlined_call_operand.hbm [shape: f32[1,256], index: 2, kind: input, shape index: {}]
  %s3 = inlined_call_operand.hbm [shape: bf16[16,256], index: 3, kind: output, shape index: {}]
  %s4 = sld [smem:[#allocation0]]
  $region42: #{tpu_custom_call.1} parent=0
    _
  %s6 = ssub.s32 1, %s4
  %s7 = scalar_select 0, %s6, %s4
  $region1: #{tpu_custom_call.1} parent=0
    #allocation3 [shape = 'u8[16384]{0}', space=vmem, size = 0x4000, scoped, tag = 'input window, operand 0, single buffered']
    #allocation4 [shape = 's32[1]{0}', space=sflag, size = 0x4, scoped, tag = 'scoped memory for tpu_custom_call.1']
    #allocation5 [shape = 's32[1]{0}', space=sflag, size = 0x4, scoped, tag = 'scoped memory for tpu_custom_call.1']
    #allocation6 [shape = 'u8[262144]{0}', space=vmem, size = 0x40000, scoped, tag = 'input window, operand 1, single buffered']
    #allocation7 [shape = 's32[1]{0}', space=sflag, size = 0x4, scoped, tag = 'scoped memory for tpu_custom_call.1']
    #allocation8 [shape = 'u8[1024]{0}', space=vmem, size = 0x400, scoped, tag = 'input window, operand 2, single buffered']
    #allocation9 [shape = 'u8[8192]{0}', space=vmem, size = 0x2000, scoped, tag = 'output window, operand 0, single buffered']
    %8 = vsyncpa [#allocation4], 0
    %9 = vsyncpa [#allocation7], 0
    %10 = vsyncpa [#allocation5], 0
    // Predicated region
    $region2: #{tpu_custom_call.1} parent=1 // pred_check
      _
    $region3: #{tpu_custom_call.1} parent=1 // pred_check_branch
      %12 = sbr.rel (0) target = $region5
    $region4: #{tpu_custom_call.1} parent=1 // pred_region
      %14 = vsyncadd [#allocation4], 0
      %s15 = sshll.u32 %s0, 4
      %s16 = int_to_ptr.hbm [resolvable:$true] %s15
      %s17 = sshll.u32 [#allocation3], 4
      %s18 = int_to_ptr.vmem [resolvable:$true] %s17
      %23 = dma.hbm_to_vmem [thread:$0]  %s16, 512, %s18, [#allocation4], 256, 256, 16
    $region5: #{tpu_custom_call.1} parent=1 // pred_fallthru
      _
    // Predicated region
    $region6: #{tpu_custom_call.1} parent=1 // pred_check
      _
    $region7: #{tpu_custom_call.1} parent=1 // pred_check_branch
      %25 = sbr.rel (0) target = $region9
    $region8: #{tpu_custom_call.1} parent=1 // pred_region
      %27 = vsyncadd [#allocation7], 0
      %s28 = sshll.u32 %s1, 4
      %s29 = int_to_ptr.hbm [resolvable:$true] %s28
      %s30 = sshll.u32 [#allocation6], 4
      %s31 = int_to_ptr.vmem [resolvable:$true] %s30
      %36 = dma.hbm_to_vmem [thread:$0]  %s29, 8192, %s31, [#allocation7], 128, 128, 8
    $region9: #{tpu_custom_call.1} parent=1 // pred_fallthru
      _
    // Predicated region
    $region10: #{tpu_custom_call.1} parent=1 // pred_check
      _
    $region11: #{tpu_custom_call.1} parent=1 // pred_check_branch
      %38 = sbr.rel (0) target = $region13
    $region12: #{tpu_custom_call.1} parent=1 // pred_region
      %40 = vsyncadd [#allocation7], 0
      %s42 = sshll.u32 %s2, 4
      %s43 = int_to_ptr.hbm [resolvable:$true] %s42
      %s44 = sshll.u32 [#allocation8], 4
      %s45 = int_to_ptr.vmem [resolvable:$true] %s44
      %47 = dma.hbm_to_vmem [thread:$0]  %s43, 32, %s45, [#allocation7]
    $region13: #{tpu_custom_call.1} parent=1 // pred_fallthru
      _
    // Predicated region
    $region14: #{tpu_custom_call.1} parent=1 // pred_check
      _
    $region15: #{tpu_custom_call.1} parent=1 // pred_check_branch
      %49 = sbr.rel (0) target = $region17
    $region16: #{tpu_custom_call.1} parent=1 // pred_region
      %51 = dma.done [#allocation4], 512
    $region17: #{tpu_custom_call.1} parent=1 // pred_fallthru
      _
    // Predicated region
    $region18: #{tpu_custom_call.1} parent=1 // pred_check
      _
    $region19: #{tpu_custom_call.1} parent=1 // pred_check_branch
      %53 = sbr.rel (0) target = $region21
    $region20: #{tpu_custom_call.1} parent=1 // pred_region
      %55 = dma.done [#allocation7], 8192
    $region21: #{tpu_custom_call.1} parent=1 // pred_fallthru
      _
    // Predicated region
    $region22: #{tpu_custom_call.1} parent=1 // pred_check
      _
    $region23: #{tpu_custom_call.1} parent=1 // pred_check_branch
      %57 = sbr.rel (0) target = $region25
    $region24: #{tpu_custom_call.1} parent=1 // pred_region
      %59 = dma.done [#allocation7], 32
    $region25: #{tpu_custom_call.1} parent=1 // pred_fallthru
      _
    %p60 = scmp.eq.s32.totalorder 0, 0
    // Predicated region
    $region26: #{tpu_custom_call.1} parent=1 // pred_check
      %p61 = pneg %p60
    $region27: #{tpu_custom_call.1} parent=1 // pred_check_branch
      %63 = sbr.rel (%p61) target = $region29
    $region28: #{tpu_custom_call.1} parent=1 // pred_region
      %64 = vst [vmem:[#allocation2] sm:$0xff] 0.0
      %65 = vst [vmem:[#allocation2 + $0x8] sm:$0xff] 0.0
      %66 = vst [vmem:[#allocation2 + $0x10] sm:$0xff] 0.0
      %67 = vst [vmem:[#allocation2 + $0x18] sm:$0xff] 0.0
    $region29: #{tpu_custom_call.1} parent=1 // pred_fallthru
      _
    %v68 = vld [vmem:[#allocation2] sm:$0xff]
    %v69 = vld [vmem:[#allocation2 + $0x8] sm:$0xff]
    %v70 = vld [vmem:[#allocation2 + $0x10] sm:$0xff]
    %v71 = vld [vmem:[#allocation2 + $0x18] sm:$0xff]
    %v72 = vld [vmem:[#allocation3] sm:$0xff]
    %v73 = vld [vmem:[#allocation3 + $0x8] sm:$0xff]
    %v74 = vld [vmem:[#allocation3 + $0x10] sm:$0xff]
    %v75 = vld [vmem:[#allocation3 + $0x18] sm:$0xff]
    %v76 = vld [vmem:[#allocation6] sm:$0xff]
    %v77 = vld [vmem:[#allocation6 + $0x8] sm:$0xff]
    %v78 = vld [vmem:[#allocation6 + $0x10] sm:$0xff]
    %v79 = vld [vmem:[#allocation6 + $0x18] sm:$0xff]
    %v80 = vld [vmem:[#allocation6 + $0x20] sm:$0xff]
    %v81 = vld [vmem:[#allocation6 + $0x28] sm:$0xff]
    %v82 = vld [vmem:[#allocation6 + $0x30] sm:$0xff]
    %v83 = vld [vmem:[#allocation6 + $0x38] sm:$0xff]
    %v84 = vld [vmem:[#allocation6 + $0x40] sm:$0xff]
    %v85 = vld [vmem:[#allocation6 + $0x48] sm:$0xff]
    %v86 = vld [vmem:[#allocation6 + $0x50] sm:$0xff]
    %v87 = vld [vmem:[#allocation6 + $0x58] sm:$0xff]
    %v88 = vld [vmem:[#allocation6 + $0x60] sm:$0xff]
    %v89 = vld [vmem:[#allocation6 + $0x68] sm:$0xff]
    %v90 = vld [vmem:[#allocation6 + $0x70] sm:$0xff]
    %v91 = vld [vmem:[#allocation6 + $0x78] sm:$0xff]
    %v92 = vld [vmem:[#allocation6 + $0x80] sm:$0xff]
    %v93 = vld [vmem:[#allocation6 + $0x88] sm:$0xff]
    %v94 = vld [vmem:[#allocation6 + $0x90] sm:$0xff]
    %v95 = vld [vmem:[#allocation6 + $0x98] sm:$0xff]
    %v96 = vld [vmem:[#allocation6 + $0xa0] sm:$0xff]
    %v97 = vld [vmem:[#allocation6 + $0xa8] sm:$0xff]
    %v98 = vld [vmem:[#allocation6 + $0xb0] sm:$0xff]
    %v99 = vld [vmem:[#allocation6 + $0xb8] sm:$0xff]
    %v100 = vld [vmem:[#allocation6 + $0xc0] sm:$0xff]
    %v101 = vld [vmem:[#allocation6 + $0xc8] sm:$0xff]
    %v102 = vld [vmem:[#allocation6 + $0xd0] sm:$0xff]
    %v103 = vld [vmem:[#allocation6 + $0xd8] sm:$0xff]
    %v104 = vld [vmem:[#allocation6 + $0xe0] sm:$0xff]
    %v105 = vld [vmem:[#allocation6 + $0xe8] sm:$0xff]
    %v106 = vld [vmem:[#allocation6 + $0xf0] sm:$0xff]
    %v107 = vld [vmem:[#allocation6 + $0xf8] sm:$0xff]
    %v108 = vld [vmem:[#allocation6 + $0x100] sm:$0xff]
    %v109 = vld [vmem:[#allocation6 + $0x108] sm:$0xff]
    %v110 = vld [vmem:[#allocation6 + $0x110] sm:$0xff]
    %v111 = vld [vmem:[#allocation6 + $0x118] sm:$0xff]
    %v112 = vld [vmem:[#allocation6 + $0x120] sm:$0xff]
    %v113 = vld [vmem:[#allocation6 + $0x128] sm:$0xff]
    %v114 = vld [vmem:[#allocation6 + $0x130] sm:$0xff]
    %v115 = vld [vmem:[#allocation6 + $0x138] sm:$0xff]
    %v116 = vld [vmem:[#allocation6 + $0x140] sm:$0xff]
    %v117 = vld [vmem:[#allocation6 + $0x148] sm:$0xff]
    %v118 = vld [vmem:[#allocation6 + $0x150] sm:$0xff]
    %v119 = vld [vmem:[#allocation6 + $0x158] sm:$0xff]
    %v120 = vld [vmem:[#allocation6 + $0x160] sm:$0xff]
    %v121 = vld [vmem:[#allocation6 + $0x168] sm:$0xff]
    %v122 = vld [vmem:[#allocation6 + $0x170] sm:$0xff]
    %v123 = vld [vmem:[#allocation6 + $0x178] sm:$0xff]
    %v124 = vld [vmem:[#allocation6 + $0x180] sm:$0xff]
    %v125 = vld [vmem:[#allocation6 + $0x188] sm:$0xff]
    %v126 = vld [vmem:[#allocation6 + $0x190] sm:$0xff]
    %v127 = vld [vmem:[#allocation6 + $0x198] sm:$0xff]
    %v128 = vld [vmem:[#allocation6 + $0x1a0] sm:$0xff]
    %v129 = vld [vmem:[#allocation6 + $0x1a8] sm:$0xff]
    %v130 = vld [vmem:[#allocation6 + $0x1b0] sm:$0xff]
    %v131 = vld [vmem:[#allocation6 + $0x1b8] sm:$0xff]
    %v132 = vld [vmem:[#allocation6 + $0x1c0] sm:$0xff]
    %v133 = vld [vmem:[#allocation6 + $0x1c8] sm:$0xff]
    %v134 = vld [vmem:[#allocation6 + $0x1d0] sm:$0xff]
    %v135 = vld [vmem:[#allocation6 + $0x1d8] sm:$0xff]
    %v136 = vld [vmem:[#allocation6 + $0x1e0] sm:$0xff]
    %v137 = vld [vmem:[#allocation6 + $0x1e8] sm:$0xff]
    %v138 = vld [vmem:[#allocation6 + $0x1f0] sm:$0xff]
    %v139 = vld [vmem:[#allocation6 + $0x1f8] sm:$0xff]
    %v144 = vunpack.c.l.b16 %v72
    %v145 = vunpack.c.h.b16 %v72
    %v146 = vunpack.c.l.b16 %v73
    %v147 = vunpack.c.h.b16 %v73
    %v148 = vunpack.c.l.b16 %v74
    %v149 = vunpack.c.h.b16 %v74
    %v150 = vunpack.c.l.b16 %v75
    %v151 = vunpack.c.h.b16 %v75
    %v152 = vpack.c.b16 %v148, %v144
    %v153 = vpack.c.b16 %v149, %v145
    %v154 = vpack.c.b16 %v150, %v146
    %v155 = vpack.c.b16 %v151, %v147
    %v224 = vunpack.c.l.b16 %v76
    %v225 = vunpack.c.h.b16 %v76
    %v226 = vunpack.c.l.b16 %v77
    %v227 = vunpack.c.h.b16 %v77
    %v228 = vunpack.c.l.b16 %v78
    %v229 = vunpack.c.h.b16 %v78
    %v230 = vunpack.c.l.b16 %v79
    %v231 = vunpack.c.h.b16 %v79
    %v232 = vunpack.c.l.b16 %v80
    %v233 = vunpack.c.h.b16 %v80
    %v234 = vunpack.c.l.b16 %v81
    %v235 = vunpack.c.h.b16 %v81
    %v236 = vunpack.c.l.b16 %v82
    %v237 = vunpack.c.h.b16 %v82
    %v238 = vunpack.c.l.b16 %v83
    %v239 = vunpack.c.h.b16 %v83
    %v240 = vunpack.c.l.b16 %v84
    %v241 = vunpack.c.h.b16 %v84
    %v242 = vunpack.c.l.b16 %v85
    %v243 = vunpack.c.h.b16 %v85
    %v244 = vunpack.c.l.b16 %v86
    %v245 = vunpack.c.h.b16 %v86
    %v246 = vunpack.c.l.b16 %v87
    %v247 = vunpack.c.h.b16 %v87
    %v248 = vunpack.c.l.b16 %v88
    %v249 = vunpack.c.h.b16 %v88
    %v250 = vunpack.c.l.b16 %v89
    %v251 = vunpack.c.h.b16 %v89
    %v252 = vunpack.c.l.b16 %v90
    %v253 = vunpack.c.h.b16 %v90
    %v254 = vunpack.c.l.b16 %v91
    %v255 = vunpack.c.h.b16 %v91
    %v256 = vunpack.c.l.b16 %v92
    %v257 = vunpack.c.h.b16 %v92
    %v258 = vunpack.c.l.b16 %v93
    %v259 = vunpack.c.h.b16 %v93
    %v260 = vunpack.c.l.b16 %v94
    %v261 = vunpack.c.h.b16 %v94
    %v262 = vunpack.c.l.b16 %v95
    %v263 = vunpack.c.h.b16 %v95
    %v264 = vunpack.c.l.b16 %v96
    %v265 = vunpack.c.h.b16 %v96
    %v266 = vunpack.c.l.b16 %v97
    %v267 = vunpack.c.h.b16 %v97
    %v268 = vunpack.c.l.b16 %v98
    %v269 = vunpack.c.h.b16 %v98
    %v270 = vunpack.c.l.b16 %v99
    %v271 = vunpack.c.h.b16 %v99
    %v272 = vunpack.c.l.b16 %v100
    %v273 = vunpack.c.h.b16 %v100
    %v274 = vunpack.c.l.b16 %v101
    %v275 = vunpack.c.h.b16 %v101
    %v276 = vunpack.c.l.b16 %v102
    %v277 = vunpack.c.h.b16 %v102
    %v278 = vunpack.c.l.b16 %v103
    %v279 = vunpack.c.h.b16 %v103
    %v280 = vunpack.c.l.b16 %v104
    %v281 = vunpack.c.h.b16 %v104
    %v282 = vunpack.c.l.b16 %v105
    %v283 = vunpack.c.h.b16 %v105
    %v284 = vunpack.c.l.b16 %v106
    %v285 = vunpack.c.h.b16 %v106
    %v286 = vunpack.c.l.b16 %v107
    %v287 = vunpack.c.h.b16 %v107
    %v288 = vunpack.c.l.b16 %v108
    %v289 = vunpack.c.h.b16 %v108
    %v290 = vunpack.c.l.b16 %v109
    %v291 = vunpack.c.h.b16 %v109
    %v292 = vunpack.c.l.b16 %v110
    %v293 = vunpack.c.h.b16 %v110
    %v294 = vunpack.c.l.b16 %v111
    %v295 = vunpack.c.h.b16 %v111
    %v296 = vunpack.c.l.b16 %v112
    %v297 = vunpack.c.h.b16 %v112
    %v298 = vunpack.c.l.b16 %v113
    %v299 = vunpack.c.h.b16 %v113
    %v300 = vunpack.c.l.b16 %v114
    %v301 = vunpack.c.h.b16 %v114
    %v302 = vunpack.c.l.b16 %v115
    %v303 = vunpack.c.h.b16 %v115
    %v304 = vunpack.c.l.b16 %v116
    %v305 = vunpack.c.h.b16 %v116
    %v306 = vunpack.c.l.b16 %v117
    %v307 = vunpack.c.h.b16 %v117
    %v308 = vunpack.c.l.b16 %v118
    %v309 = vunpack.c.h.b16 %v118
    %v310 = vunpack.c.l.b16 %v119
    %v311 = vunpack.c.h.b16 %v119
    %v312 = vunpack.c.l.b16 %v120
    %v313 = vunpack.c.h.b16 %v120
    %v314 = vunpack.c.l.b16 %v121
    %v315 = vunpack.c.h.b16 %v121
    %v316 = vunpack.c.l.b16 %v122
    %v317 = vunpack.c.h.b16 %v122
    %v318 = vunpack.c.l.b16 %v123
    %v319 = vunpack.c.h.b16 %v123
    %v320 = vunpack.c.l.b16 %v124
    %v321 = vunpack.c.h.b16 %v124
    %v322 = vunpack.c.l.b16 %v125
    %v323 = vunpack.c.h.b16 %v125
    %v324 = vunpack.c.l.b16 %v126
    %v325 = vunpack.c.h.b16 %v126
    %v326 = vunpack.c.l.b16 %v127
    %v327 = vunpack.c.h.b16 %v127
    %v328 = vunpack.c.l.b16 %v128
    %v329 = vunpack.c.h.b16 %v128
    %v330 = vunpack.c.l.b16 %v129
    %v331 = vunpack.c.h.b16 %v129
    %v332 = vunpack.c.l.b16 %v130
    %v333 = vunpack.c.h.b16 %v130
    %v334 = vunpack.c.l.b16 %v131
    %v335 = vunpack.c.h.b16 %v131
    %v336 = vunpack.c.l.b16 %v132
    %v337 = vunpack.c.h.b16 %v132
    %v338 = vunpack.c.l.b16 %v133
    %v339 = vunpack.c.h.b16 %v133
    %v340 = vunpack.c.l.b16 %v134
    %v341 = vunpack.c.h.b16 %v134
    %v342 = vunpack.c.l.b16 %v135
    %v343 = vunpack.c.h.b16 %v135
    %v344 = vunpack.c.l.b16 %v136
    %v345 = vunpack.c.h.b16 %v136
    %v346 = vunpack.c.l.b16 %v137
    %v347 = vunpack.c.h.b16 %v137
    %v348 = vunpack.c.l.b16 %v138
    %v349 = vunpack.c.h.b16 %v138
    %v350 = vunpack.c.l.b16 %v139
    %v351 = vunpack.c.h.b16 %v139
    %v352 = vpack.c.b16 %v226, %v224
    %v353 = vpack.c.b16 %v227, %v225
    %v354 = vpack.c.b16 %v230, %v228
    %v355 = vpack.c.b16 %v231, %v229
    %v356 = vpack.c.b16 %v234, %v232
    %v357 = vpack.c.b16 %v235, %v233
    %v358 = vpack.c.b16 %v238, %v236
    %v359 = vpack.c.b16 %v239, %v237
    %v360 = vpack.c.b16 %v242, %v240
    %v361 = vpack.c.b16 %v243, %v241
    %v362 = vpack.c.b16 %v246, %v244
    %v363 = vpack.c.b16 %v247, %v245
    %v364 = vpack.c.b16 %v250, %v248
    %v365 = vpack.c.b16 %v251, %v249
    %v366 = vpack.c.b16 %v254, %v252
    %v367 = vpack.c.b16 %v255, %v253
    %v368 = vpack.c.b16 %v258, %v256
    %v369 = vpack.c.b16 %v259, %v257
    %v370 = vpack.c.b16 %v262, %v260
    %v371 = vpack.c.b16 %v263, %v261
    %v372 = vpack.c.b16 %v266, %v264
    %v373 = vpack.c.b16 %v267, %v265
    %v374 = vpack.c.b16 %v270, %v268
    %v375 = vpack.c.b16 %v271, %v269
    %v376 = vpack.c.b16 %v274, %v272
    %v377 = vpack.c.b16 %v275, %v273
    %v378 = vpack.c.b16 %v278, %v276
    %v379 = vpack.c.b16 %v279, %v277
    %v380 = vpack.c.b16 %v282, %v280
    %v381 = vpack.c.b16 %v283, %v281
    %v382 = vpack.c.b16 %v286, %v284
    %v383 = vpack.c.b16 %v287, %v285
    %v384 = vpack.c.b16 %v290, %v288
    %v385 = vpack.c.b16 %v291, %v289
    %v386 = vpack.c.b16 %v294, %v292
    %v387 = vpack.c.b16 %v295, %v293
    %v388 = vpack.c.b16 %v298, %v296
    %v389 = vpack.c.b16 %v299, %v297
    %v390 = vpack.c.b16 %v302, %v300
    %v391 = vpack.c.b16 %v303, %v301
    %v392 = vpack.c.b16 %v306, %v304
    %v393 = vpack.c.b16 %v307, %v305
    %v394 = vpack.c.b16 %v310, %v308
    %v395 = vpack.c.b16 %v311, %v309
    %v396 = vpack.c.b16 %v314, %v312
    %v397 = vpack.c.b16 %v315, %v313
    %v398 = vpack.c.b16 %v318, %v316
    %v399 = vpack.c.b16 %v319, %v317
    %v400 = vpack.c.b16 %v322, %v320
    %v401 = vpack.c.b16 %v323, %v321
    %v402 = vpack.c.b16 %v326, %v324
    %v403 = vpack.c.b16 %v327, %v325
    %v404 = vpack.c.b16 %v330, %v328
    %v405 = vpack.c.b16 %v331, %v329
    %v406 = vpack.c.b16 %v334, %v332
    %v407 = vpack.c.b16 %v335, %v333
    %v408 = vpack.c.b16 %v338, %v336
    %v409 = vpack.c.b16 %v339, %v337
    %v410 = vpack.c.b16 %v342, %v340
    %v411 = vpack.c.b16 %v343, %v341
    %v412 = vpack.c.b16 %v346, %v344
    %v413 = vpack.c.b16 %v347, %v345
    %v414 = vpack.c.b16 %v350, %v348
    %v415 = vpack.c.b16 %v351, %v349
    %480 = vmatpush.bf16.msra.mxu0 %v366
    %481 = vmatpush.bf16.msra.mxu0 %v364
    %482 = vmatpush.bf16.msra.mxu0 %v362
    %483 = vmatpush.bf16.msra.mxu0 %v360
    %484 = vmatpush.bf16.msra.mxu0 %v358
    %485 = vmatpush.bf16.msra.mxu0 %v356
    %486 = vmatpush.bf16.msra.mxu0 %v354
    %487 = vmatpush.bf16.msra.mxu0 %v352
    %488 = vmatmul.bf16.gmra.mxu0 %v152
    %v489 = vpop.f32.mrf.mxu0
    %v490 = vadd.f32 0.0, %v489
    %v491 = vpop.f32.mrf.mxu0
    %v492 = vadd.f32 0.0, %v491
    %493 = vdwg.mxu0
    %494 = vmatpush.bf16.msra.mxu0 %v382
    %495 = vmatpush.bf16.msra.mxu0 %v380
    %496 = vmatpush.bf16.msra.mxu0 %v378
    %497 = vmatpush.bf16.msra.mxu0 %v376
    %498 = vmatpush.bf16.msra.mxu0 %v374
    %499 = vmatpush.bf16.msra.mxu0 %v372
    %500 = vmatpush.bf16.msra.mxu0 %v370
    %501 = vmatpush.bf16.msra.mxu0 %v368
    %502 = vmatmul.bf16.gmra.mxu0 %v153
    %v503 = vpop.f32.mrf.mxu0
    %v504 = vadd.f32 %v490, %v503
    %v505 = vpop.f32.mrf.mxu0
    %v506 = vadd.f32 %v492, %v505
    %507 = vdwg.mxu0
    %508 = vmatpush.bf16.msra.mxu0 %v398
    %509 = vmatpush.bf16.msra.mxu0 %v396
    %510 = vmatpush.bf16.msra.mxu0 %v394
    %511 = vmatpush.bf16.msra.mxu0 %v392
    %512 = vmatpush.bf16.msra.mxu0 %v390
    %513 = vmatpush.bf16.msra.mxu0 %v388
    %514 = vmatpush.bf16.msra.mxu0 %v386
    %515 = vmatpush.bf16.msra.mxu0 %v384
    %516 = vmatmul.bf16.gmra.mxu0 %v154
    %v517 = vpop.f32.mrf.mxu0
    %v518 = vadd.f32 %v504, %v517
    %v519 = vpop.f32.mrf.mxu0
    %v520 = vadd.f32 %v506, %v519
    %521 = vdwg.mxu0
    %522 = vmatpush.bf16.msra.mxu0 %v414
    %523 = vmatpush.bf16.msra.mxu0 %v412
    %524 = vmatpush.bf16.msra.mxu0 %v410
    %525 = vmatpush.bf16.msra.mxu0 %v408
    %526 = vmatpush.bf16.msra.mxu0 %v406
    %527 = vmatpush.bf16.msra.mxu0 %v404
    %528 = vmatpush.bf16.msra.mxu0 %v402
    %529 = vmatpush.bf16.msra.mxu0 %v400
    %530 = vmatmul.bf16.gmra.mxu0 %v155
    %v531 = vpop.f32.mrf.mxu0
    %v532 = vadd.f32 %v518, %v531
    %v533 = vpop.f32.mrf.mxu0
    %v534 = vadd.f32 %v520, %v533
    %535 = vdwg.mxu0
    %536 = vmatpush.bf16.msra.mxu0 %v367
    %537 = vmatpush.bf16.msra.mxu0 %v365
    %538 = vmatpush.bf16.msra.mxu0 %v363
    %539 = vmatpush.bf16.msra.mxu0 %v361
    %540 = vmatpush.bf16.msra.mxu0 %v359
    %541 = vmatpush.bf16.msra.mxu0 %v357
    %542 = vmatpush.bf16.msra.mxu0 %v355
    %543 = vmatpush.bf16.msra.mxu0 %v353
    %544 = vmatmul.bf16.gmra.mxu0 %v152
    %v545 = vpop.f32.mrf.mxu0
    %v546 = vadd.f32 0.0, %v545
    %v547 = vpop.f32.mrf.mxu0
    %v548 = vadd.f32 0.0, %v547
    %549 = vdwg.mxu0
    %550 = vmatpush.bf16.msra.mxu0 %v383
    %551 = vmatpush.bf16.msra.mxu0 %v381
    %552 = vmatpush.bf16.msra.mxu0 %v379
    %553 = vmatpush.bf16.msra.mxu0 %v377
    %554 = vmatpush.bf16.msra.mxu0 %v375
    %555 = vmatpush.bf16.msra.mxu0 %v373
    %556 = vmatpush.bf16.msra.mxu0 %v371
    %557 = vmatpush.bf16.msra.mxu0 %v369
    %558 = vmatmul.bf16.gmra.mxu0 %v153
    %v559 = vpop.f32.mrf.mxu0
    %v560 = vadd.f32 %v546, %v559
    %v561 = vpop.f32.mrf.mxu0
    %v562 = vadd.f32 %v548, %v561
    %563 = vdwg.mxu0
    %564 = vmatpush.bf16.msra.mxu0 %v399
    %565 = vmatpush.bf16.msra.mxu0 %v397
    %566 = vmatpush.bf16.msra.mxu0 %v395
    %567 = vmatpush.bf16.msra.mxu0 %v393
    %568 = vmatpush.bf16.msra.mxu0 %v391
    %569 = vmatpush.bf16.msra.mxu0 %v389
    %570 = vmatpush.bf16.msra.mxu0 %v387
    %571 = vmatpush.bf16.msra.mxu0 %v385
    %572 = vmatmul.bf16.gmra.mxu0 %v154
    %v573 = vpop.f32.mrf.mxu0
    %v574 = vadd.f32 %v560, %v573
    %v575 = vpop.f32.mrf.mxu0
    %v576 = vadd.f32 %v562, %v575
    %577 = vdwg.mxu0
    %578 = vmatpush.bf16.msra.mxu0 %v415
    %579 = vmatpush.bf16.msra.mxu0 %v413
    %580 = vmatpush.bf16.msra.mxu0 %v411
    %581 = vmatpush.bf16.msra.mxu0 %v409
    %582 = vmatpush.bf16.msra.mxu0 %v407
    %583 = vmatpush.bf16.msra.mxu0 %v405
    %584 = vmatpush.bf16.msra.mxu0 %v403
    %585 = vmatpush.bf16.msra.mxu0 %v401
    %586 = vmatmul.bf16.gmra.mxu0 %v155
    %v587 = vpop.f32.mrf.mxu0
    %v588 = vadd.f32 %v574, %v587
    %v589 = vpop.f32.mrf.mxu0
    %v590 = vadd.f32 %v576, %v589
    %591 = vdwg.mxu0
    %v592 = vadd.f32 %v68, %v532
    %v593 = vadd.f32 %v69, %v588
    %v594 = vadd.f32 %v70, %v534
    %v595 = vadd.f32 %v71, %v590
    %596 = vst [vmem:[#allocation2] sm:$0xff] %v592
    %597 = vst [vmem:[#allocation2 + $0x8] sm:$0xff] %v593
    %598 = vst [vmem:[#allocation2 + $0x10] sm:$0xff] %v594
    %599 = vst [vmem:[#allocation2 + $0x18] sm:$0xff] %v595
    // Predicated region
    $region30: #{tpu_custom_call.1} parent=1 // pred_check
      %p600 = pneg %p60
    $region31: #{tpu_custom_call.1} parent=1 // pred_check_branch
      %602 = sbr.rel (%p600) target = $region33
    $region32: #{tpu_custom_call.1} parent=1 // pred_region
      %v603 = vld [vmem:[#allocation2] sm:$0xff]
      %v604 = vld [vmem:[#allocation2 + $0x8] sm:$0xff]
      %v605 = vld [vmem:[#allocation2 + $0x10] sm:$0xff]
      %v606 = vld [vmem:[#allocation2 + $0x18] sm:$0xff]
      %v607 = vld [vmem:[#allocation8] sm:$0x3]
      %v609 = vperm.slane %v607, 0
      %v610 = vperm.slane %v607, 1
      %v613 = vadd.f32 %v603, %v609
      %v614 = vadd.f32 %v604, %v610
      %v615 = vadd.f32 %v605, %v609
      %v616 = vadd.f32 %v606, %v610
      %v617 = vmax.f32 %v613, 0.0
      %v618 = vmax.f32 %v614, 0.0
      %v619 = vmax.f32 %v615, 0.0
      %v620 = vmax.f32 %v616, 0.0
      %v621 = vpack.c.bf16 %v618, %v617
      %v622 = vpack.c.bf16 %v620, %v619
      %623 = vst [vmem:[#allocation9] sm:$0xff] %v621
      %624 = vst [vmem:[#allocation9 + $0x8] sm:$0xff] %v622
    $region33: #{tpu_custom_call.1} parent=1 // pred_fallthru
      _
    // Predicated region
    $region34: #{tpu_custom_call.1} parent=1 // pred_check
      _
    $region35: #{tpu_custom_call.1} parent=1 // pred_check_branch
      %626 = sbr.rel (0) target = $region37
    $region36: #{tpu_custom_call.1} parent=1 // pred_region
      %628 = vsyncadd [#allocation5], 0
      %s629 = sshll.u32 [#allocation9], 4
      %s630 = int_to_ptr.vmem [resolvable:$true] %s629
      %s631 = sshll.u32 %s3, 4
      %s632 = int_to_ptr.hbm [resolvable:$true] %s631
      %637 = dma.vmem_to_hbm [thread:$0]  %s630, 256, %s632, [#allocation5], 128, 128, 8
    $region37: #{tpu_custom_call.1} parent=1 // pred_fallthru
      _
    // Predicated region
    $region38: #{tpu_custom_call.1} parent=1 // pred_check
      _
    $region39: #{tpu_custom_call.1} parent=1 // pred_check_branch
      %639 = sbr.rel (0) target = $region41
    $region40: #{tpu_custom_call.1} parent=1 // pred_region
      %641 = dma.done [#allocation5], 256
    $region41: #{tpu_custom_call.1} parent=1 // pred_fallthru
      _
    %642 = vsyncpa [#allocation4], 1
    %643 = vsyncpa [#allocation7], 1
    %644 = vsyncpa [#allocation5], 1

</llo_original>
